<compile_context>
chip_gen: v6e
topology: v6e:2x2x1
jax: 0.10.0
libtpu: 0.0.40
codegen_flags: <defaults>
</compile_context>

<pallas_src>
import functools

import jax
import jax.numpy as jnp
from jax.experimental import pallas as pl
from jax.experimental.pallas import tpu as pltpu


_VMEM_BLOCK_BUDGET = 16 * 1024 * 1024   # x + y blocks, double-buffered
_VMEM_LIMIT = 32 * 1024 * 1024          # scoped VMEM limit (safe on v5e..v7x)


def _choose_channel_tile(N, C, L, itemsize, budget_bytes=_VMEM_BLOCK_BUDGET):
    """Largest channel tile whose double-buffered x+y blocks fit the budget.

    The channel tile is the second-to-last dim of the (N, TC, L) block, so it
    must be a multiple of 8 (f32 sublane tiling) or cover the full C.
    """
    bytes_per_channel = 4 * N * L * itemsize   # x blk + y blk, 2 buffers each
    max_tc = max(1, budget_bytes // max(1, bytes_per_channel))
    if max_tc >= C:
        return C
    # TODO(synk): if even TC=8 overflows the budget (enormous N*H*W per
    # channel), a two-pass stats/normalize pipeline over an L grid axis with
    # scratch accumulators would be required.
    return min(C, max(8, (max_tc // 8) * 8))


def _choose_spatial_tile(N, tc, L, itemsize, budget_bytes=_VMEM_BLOCK_BUDGET):
    """Spatial (lane) tile for the purely elementwise eval kernel."""
    bytes_per_l = 4 * N * tc * itemsize
    max_tl = max(1, budget_bytes // max(1, bytes_per_l))
    if max_tl >= L or L % 128 != 0:
        return L
    return min(L, max(128, (max_tl // 128) * 128))


def _batch_renorm_train_kernel(x_ref, w_ref, b_ref, y_ref, mean_ref, sigma_ref,
                               *, eps):
    xf = x_ref[...].astype(jnp.float32)              # (N, TC, L)
    _, _, L = xf.shape
    # Per-(sample, channel) first/second moments over the spatial axis,
    # accumulated in f32 (jnp.sum lowers to VALU accumulation across lane
    # vregs plus a single cross-lane XLU reduce per row -> stays HBM-bound).
    s1 = jnp.sum(xf, axis=-1, keepdims=True)         # (N, TC, 1)
    s2 = jnp.sum(xf * xf, axis=-1, keepdims=True)    # (N, TC, 1)
    mean_in = s1 * (1.0 / L)
    denom = max(L - 1, 1)                            # torch.var: unbiased (L-1)
    var_in = (s2 - s1 * mean_in) * (1.0 / denom)
    temp = var_in + mean_in * mean_in
    mean = jnp.mean(mean_in, axis=0, keepdims=True)  # (1, TC, 1)
    var_tot = jnp.mean(temp, axis=0, keepdims=True) - mean * mean
    sigma = jnp.sqrt(jnp.maximum(var_tot, 0.0))      # clamp: rounding can dip < 0
    # Fold normalize + affine into a single per-channel scale/shift:
    #   (x - mean) / (sigma + eps) * w + b  ==  x * scale + shift
    # so the full-tile work is just one mul + one add per element.
    inv = 1.0 / (sigma + eps)                        # per-channel only: cheap
    scale = w_ref[...] * inv                         # (1, TC, 1)
    shift = b_ref[...] - mean * scale
    y_ref[...] = (xf * scale + shift).astype(y_ref.dtype)
    mean_ref[...] = mean
    sigma_ref[...] = sigma


def _batch_renorm_eval_kernel(x_ref, w_ref, b_ref, m_ref, s_ref, y_ref, *, eps):
    inv = 1.0 / (s_ref[...] + eps)                   # per-channel only
    scale = w_ref[...] * inv
    shift = b_ref[...] - m_ref[...] * scale
    xf = x_ref[...].astype(jnp.float32)
    y_ref[...] = (xf * scale + shift).astype(y_ref.dtype)


@functools.partial(jax.jit, static_argnames=("eps", "momentum", "training"))
def batch_renorm2d_forward(x, weight, bias, running_mean, running_sigma,
                           num_batches_tracked, *, eps=1e-5, momentum=0.99,
                           training=True):
    """Matches BatchRenorm2d.forward.  x: (N, C, H, W) NCHW."""
    N, C, H, W = x.shape
    L = H * W
    x3 = x.reshape(N, C, L)
    w3 = weight.reshape(1, C, 1).astype(jnp.float32)
    b3 = bias.reshape(1, C, 1).astype(jnp.float32)
    itemsize = x.dtype.itemsize
    tc = _choose_channel_tile(N, C, L, itemsize)
    n_cblk = pl.cdiv(C, tc)

    if training:
        kernel = functools.partial(_batch_renorm_train_kernel, eps=eps)
        y3, mean, sigma = pl.pallas_call(
            kernel,
            grid=(n_cblk,),
            in_specs=[
                pl.BlockSpec((N, tc, L), lambda c: (0, c, 0)),
                pl.BlockSpec((1, tc, 1), lambda c: (0, c, 0)),
                pl.BlockSpec((1, tc, 1), lambda c: (0, c, 0)),
            ],
            out_specs=[
                pl.BlockSpec((N, tc, L), lambda c: (0, c, 0)),
                pl.BlockSpec((1, tc, 1), lambda c: (0, c, 0)),
                pl.BlockSpec((1, tc, 1), lambda c: (0, c, 0)),
            ],
            out_shape=[
                jax.ShapeDtypeStruct((N, C, L), x.dtype),
                jax.ShapeDtypeStruct((1, C, 1), jnp.float32),
                jax.ShapeDtypeStruct((1, C, 1), jnp.float32),
            ],
            compiler_params=pltpu.CompilerParams(
                dimension_semantics=("parallel",),
                vmem_limit_bytes=_VMEM_LIMIT,
            ),
        )(x3, w3, b3)
        # Running-buffer EMA updates (same jit -> no extra dispatch / HBM
        # round trips).  Same math as the PyTorch module.
        new_running_mean = running_mean * momentum + (1.0 - momentum) * mean
        new_running_sigma = running_sigma * momentum + (1.0 - momentum) * sigma
        new_num_batches = num_batches_tracked + 1
        return (y3.reshape(N, C, H, W), new_running_mean, new_running_sigma,
                new_num_batches)
    else:
        tl = _choose_spatial_tile(N, tc, L, itemsize)
        n_lblk = pl.cdiv(L, tl)
        kernel = functools.partial(_batch_renorm_eval_kernel, eps=eps)
        y3 = pl.pallas_call(
            kernel,
            grid=(n_cblk, n_lblk),
            in_specs=[
                pl.BlockSpec((N, tc, tl), lambda c, s: (0, c, s)),
                pl.BlockSpec((1, tc, 1), lambda c, s: (0, c, 0)),
                pl.BlockSpec((1, tc, 1), lambda c, s: (0, c, 0)),
                pl.BlockSpec((1, tc, 1), lambda c, s: (0, c, 0)),
                pl.BlockSpec((1, tc, 1), lambda c, s: (0, c, 0)),
            ],
            out_specs=pl.BlockSpec((N, tc, tl), lambda c, s: (0, c, s)),
            out_shape=jax.ShapeDtypeStruct((N, C, L), x.dtype),
            compiler_params=pltpu.CompilerParams(
                dimension_semantics=("parallel", "parallel"),
                vmem_limit_bytes=_VMEM_LIMIT,
            ),
        )(x3, w3, b3, running_mean.astype(jnp.float32),
          running_sigma.astype(jnp.float32))
        return (y3.reshape(N, C, H, W), running_mean, running_sigma,
                num_batches_tracked)


def _reference_train_forward(x, weight, bias, eps):
    # pure-JAX reference of the PyTorch training forward
    N, C, H, W = x.shape
    xv = x.reshape(N, C, -1).astype(jnp.float32)
    mean_in = xv.mean(-1, keepdims=True)
    var_in = xv.var(-1, keepdims=True, ddof=1)
    temp = var_in + mean_in ** 2
    mean = mean_in.mean(0, keepdims=True)
    sigma = jnp.sqrt(temp.mean(0, keepdims=True) - mean ** 2)
    y = (xv - mean) / (sigma + eps)
    return y.reshape(N, C, H, W) * weight + bias, mean, sigma


if __name__ == "__main__":
    key = jax.random.PRNGKey(0)
    N, C, H, W = 2, 4, 16, 16
    x = jax.random.normal(key, (N, C, H, W), dtype=jnp.float32) * 2.0 + 0.5

    # deterministic parameter / buffer init (as in BatchRenorm2d.__init__)
    weight = jnp.ones((1, C, 1, 1), dtype=jnp.float32)
    bias = jnp.zeros((1, C, 1, 1), dtype=jnp.float32)
    running_mean = jnp.zeros((1, C, 1), dtype=jnp.float32)
    running_sigma = jnp.zeros((1, C, 1), dtype=jnp.float32)
    num_batches_tracked = jnp.array(0, dtype=jnp.int32)

    # --- training path ---
    y, new_rm, new_rs, new_nbt = batch_renorm2d_forward(
        x, weight, bias, running_mean, running_sigma, num_batches_tracked,
        eps=1e-5, momentum=0.99, training=True)
    jax.block_until_ready(y)

    y_ref, mean_ref, sigma_ref = _reference_train_forward(x, weight, bias, 1e-5)
    assert jnp.allclose(y, y_ref, atol=1e-4, rtol=1e-4), "train output mismatch"
    assert jnp.allclose(new_rm, 0.01 * mean_ref, atol=1e-5), "running_mean mismatch"
    assert jnp.allclose(new_rs, 0.01 * sigma_ref, atol=1e-5), "running_sigma mismatch"
    assert int(new_nbt) == 1, "num_batches_tracked mismatch"

    # --- eval path (uses the freshly updated buffers) ---
    y_eval, rm2, rs2, nbt2 = batch_renorm2d_forward(
        x, weight, bias, new_rm, new_rs, new_nbt,
        eps=1e-5, momentum=0.99, training=False)
    jax.block_until_ready(y_eval)

    xv = x.reshape(N, C, -1)
    y_eval_ref = ((xv - new_rm) / (new_rs + 1e-5)).reshape(N, C, H, W)
    y_eval_ref = y_eval_ref * weight + bias
    assert jnp.allclose(y_eval, y_eval_ref, atol=1e-4, rtol=1e-4), \
        "eval output mismatch"

    print("KERNEL_OK")
</pallas_src>

<mosaic_0001>
module attributes {stable_mosaic.version = 11 : i64} {
  func.func @_batch_renorm_train_kernel(%arg0: i32, %arg1: memref<2x4x256xf32, #tpu.memory_space<vmem>>, %arg2: memref<1x4x1xf32, #tpu.memory_space<vmem>>, %arg3: memref<1x4x1xf32, #tpu.memory_space<vmem>>, %arg4: memref<2x4x256xf32, #tpu.memory_space<vmem>>, %arg5: memref<1x4x1xf32, #tpu.memory_space<vmem>>, %arg6: memref<1x4x1xf32, #tpu.memory_space<vmem>>) attributes {dimension_semantics = [#tpu.dimension_semantics<parallel>], iteration_bounds = array<i64: 1>, scalar_prefetch = 0 : i64, scratch_operands = 0 : i64, tpu.core_type = #tpu.core_type<tc>, window_params = [{transform_indices = @transform_0, window_bounds = array<i64: 2, 4, 256>}, {transform_indices = @transform_1, window_bounds = array<i64: 1, 4, 1>}, {transform_indices = @transform_2, window_bounds = array<i64: 1, 4, 1>}, {transform_indices = @transform_3, window_bounds = array<i64: 2, 4, 256>}, {transform_indices = @transform_4, window_bounds = array<i64: 1, 4, 1>}, {transform_indices = @transform_5, window_bounds = array<i64: 1, 4, 1>}]} {
    %c0 = arith.constant 0 : index
    %c0_0 = arith.constant 0 : index
    %c0_1 = arith.constant 0 : index
    %0 = vector.load %arg1[%c0, %c0_0, %c0_1] : memref<2x4x256xf32, #tpu.memory_space<vmem>>, vector<2x4x256xf32>
    %cst = arith.constant dense<0.000000e+00> : vector<2x4xf32>
    %1 = vector.multi_reduction <add>, %0, %cst [2] : vector<2x4x256xf32> to vector<2x4xf32>
    %2 = vector.shape_cast %1 : vector<2x4xf32> to vector<2x4x1xf32>
    %3 = arith.mulf %0, %0 : vector<2x4x256xf32>
    %cst_2 = arith.constant dense<0.000000e+00> : vector<2x4xf32>
    %4 = vector.multi_reduction <add>, %3, %cst_2 [2] : vector<2x4x256xf32> to vector<2x4xf32>
    %5 = vector.shape_cast %4 : vector<2x4xf32> to vector<2x4x1xf32>
    %cst_3 = arith.constant 3.906250e-03 : f32
    %6 = vector.broadcast %cst_3 : f32 to vector<2x4x1xf32>
    %7 = arith.mulf %2, %6 : vector<2x4x1xf32>
    %8 = arith.mulf %2, %7 : vector<2x4x1xf32>
    %9 = arith.subf %5, %8 : vector<2x4x1xf32>
    %cst_4 = arith.constant 0.00392156886 : f32
    %10 = vector.broadcast %cst_4 : f32 to vector<2x4x1xf32>
    %11 = arith.mulf %9, %10 : vector<2x4x1xf32>
    %12 = arith.mulf %7, %7 : vector<2x4x1xf32>
    %13 = arith.addf %11, %12 : vector<2x4x1xf32>
    %cst_5 = arith.constant dense<0.000000e+00> : vector<4x1xf32>
    %14 = vector.multi_reduction <add>, %7, %cst_5 [0] : vector<2x4x1xf32> to vector<4x1xf32>
    %15 = vector.shape_cast %14 : vector<4x1xf32> to vector<1x4x1xf32>
    %cst_6 = arith.constant 2.000000e+00 : f32
    %16 = vector.broadcast %cst_6 : f32 to vector<1x4x1xf32>
    %17 = arith.divf %15, %16 : vector<1x4x1xf32>
    %cst_7 = arith.constant dense<0.000000e+00> : vector<4x1xf32>
    %18 = vector.multi_reduction <add>, %13, %cst_7 [0] : vector<2x4x1xf32> to vector<4x1xf32>
    %19 = vector.shape_cast %18 : vector<4x1xf32> to vector<1x4x1xf32>
    %cst_8 = arith.constant 2.000000e+00 : f32
    %20 = vector.broadcast %cst_8 : f32 to vector<1x4x1xf32>
    %21 = arith.divf %19, %20 : vector<1x4x1xf32>
    %22 = arith.mulf %17, %17 : vector<1x4x1xf32>
    %23 = arith.subf %21, %22 : vector<1x4x1xf32>
    %cst_9 = arith.constant 0.000000e+00 : f32
    %24 = vector.broadcast %cst_9 : f32 to vector<1x4x1xf32>
    %25 = arith.maximumf %23, %24 : vector<1x4x1xf32>
    %26 = math.sqrt %25 : vector<1x4x1xf32>
    %cst_10 = arith.constant 9.99999974E-6 : f32
    %27 = vector.broadcast %cst_10 : f32 to vector<1x4x1xf32>
    %28 = arith.addf %26, %27 : vector<1x4x1xf32>
    %cst_11 = arith.constant 1.000000e+00 : f32
    %29 = vector.broadcast %cst_11 : f32 to vector<1x4x1xf32>
    %30 = arith.divf %29, %28 : vector<1x4x1xf32>
    %c0_12 = arith.constant 0 : index
    %c0_13 = arith.constant 0 : index
    %c0_14 = arith.constant 0 : index
    %31 = vector.load %arg2[%c0_12, %c0_13, %c0_14] : memref<1x4x1xf32, #tpu.memory_space<vmem>>, vector<1x4x1xf32>
    %32 = arith.mulf %31, %30 : vector<1x4x1xf32>
    %c0_15 = arith.constant 0 : index
    %c0_16 = arith.constant 0 : index
    %c0_17 = arith.constant 0 : index
    %33 = vector.load %arg3[%c0_15, %c0_16, %c0_17] : memref<1x4x1xf32, #tpu.memory_space<vmem>>, vector<1x4x1xf32>
    %34 = arith.mulf %17, %32 : vector<1x4x1xf32>
    %35 = arith.subf %33, %34 : vector<1x4x1xf32>
    %36 = vector.broadcast %32 : vector<1x4x1xf32> to vector<2x4x256xf32>
    %37 = arith.mulf %0, %36 : vector<2x4x256xf32>
    %38 = vector.broadcast %35 : vector<1x4x1xf32> to vector<2x4x256xf32>
    %39 = arith.addf %37, %38 : vector<2x4x256xf32>
    %c0_18 = arith.constant 0 : index
    %c0_19 = arith.constant 0 : index
    %c0_20 = arith.constant 0 : index
    %40 = vector.load %arg4[%c0_18, %c0_19, %c0_20] : memref<2x4x256xf32, #tpu.memory_space<vmem>>, vector<2x4x256xf32>
    tpu.vector_store %arg4[%c0_18, %c0_19, %c0_20], %39 {strides = array<i32>} : memref<2x4x256xf32, #tpu.memory_space<vmem>>, vector<2x4x256xf32>,
    %c0_21 = arith.constant 0 : index
    %c0_22 = arith.constant 0 : index
    %c0_23 = arith.constant 0 : index
    %41 = vector.load %arg5[%c0_21, %c0_22, %c0_23] : memref<1x4x1xf32, #tpu.memory_space<vmem>>, vector<1x4x1xf32>
    tpu.vector_store %arg5[%c0_21, %c0_22, %c0_23], %17 {strides = array<i32>} : memref<1x4x1xf32, #tpu.memory_space<vmem>>, vector<1x4x1xf32>,
    %c0_24 = arith.constant 0 : index
    %c0_25 = arith.constant 0 : index
    %c0_26 = arith.constant 0 : index
    %42 = vector.load %arg6[%c0_24, %c0_25, %c0_26] : memref<1x4x1xf32, #tpu.memory_space<vmem>>, vector<1x4x1xf32>
    tpu.vector_store %arg6[%c0_24, %c0_25, %c0_26], %26 {strides = array<i32>} : memref<1x4x1xf32, #tpu.memory_space<vmem>>, vector<1x4x1xf32>,
    return
  }
  func.func @transform_0(%arg0: i32) -> (i32, i32, i32) {
    %c0_i32 = arith.constant 0 : i32
    %c0_i32_0 = arith.constant 0 : i32
    %c0_i32_1 = arith.constant 0 : i32
    return %c0_i32, %arg0, %c0_i32_0 : i32, i32, i32
  }
  func.func @transform_1(%arg0: i32) -> (i32, i32, i32) {
    %c0_i32 = arith.constant 0 : i32
    %c0_i32_0 = arith.constant 0 : i32
    %c0_i32_1 = arith.constant 0 : i32
    return %c0_i32, %arg0, %c0_i32_0 : i32, i32, i32
  }
  func.func @transform_2(%arg0: i32) -> (i32, i32, i32) {
    %c0_i32 = arith.constant 0 : i32
    %c0_i32_0 = arith.constant 0 : i32
    %c0_i32_1 = arith.constant 0 : i32
    return %c0_i32, %arg0, %c0_i32_0 : i32, i32, i32
  }
  func.func @transform_3(%arg0: i32) -> (i32, i32, i32) {
    %c0_i32 = arith.constant 0 : i32
    %c0_i32_0 = arith.constant 0 : i32
    %c0_i32_1 = arith.constant 0 : i32
    return %c0_i32, %arg0, %c0_i32_0 : i32, i32, i32
  }
  func.func @transform_4(%arg0: i32) -> (i32, i32, i32) {
    %c0_i32 = arith.constant 0 : i32
    %c0_i32_0 = arith.constant 0 : i32
    %c0_i32_1 = arith.constant 0 : i32
    return %c0_i32, %arg0, %c0_i32_0 : i32, i32, i32
  }
  func.func @transform_5(%arg0: i32) -> (i32, i32, i32) {
    %c0_i32 = arith.constant 0 : i32
    %c0_i32_0 = arith.constant 0 : i32
    %c0_i32_1 = arith.constant 0 : i32
    return %c0_i32, %arg0, %c0_i32_0 : i32, i32, i32
  }
}

</mosaic_0001>

<llo_original>
// kernel: batch_renorm2d_forward.1
$region0: #{batch_renorm2d_forward.1}
  #allocation0 [shape = 'u32[]', space=smem, size = 0x4, offset = 0x4, fixed_abs, tag = 'smem constant byte address 0x4 - core index']
  #allocation1 [shape = 'u32[144,128]{1,0:T(1,128)}', space=vmem, size = 0x12000, scoped, tag = 'internal scratch']
  %s0 = inlined_call_operand.vmem [shape: f32[2,4,256], index: 0, kind: input, shape index: {}]
  %s1 = inlined_call_operand.vmem [shape: f32[1,4,1], index: 1, kind: input, shape index: {}]
  %s2 = inlined_call_operand.vmem [shape: f32[1,4,1], index: 2, kind: input, shape index: {}]
  %s3 = inlined_call_operand.vmem [shape: f32[2,4,256], index: 3, kind: output, shape index: {0}]
  %s4 = inlined_call_operand.vmem [shape: f32[1,4,1], index: 4, kind: output, shape index: {1}]
  %s5 = inlined_call_operand.vmem [shape: f32[1,4,1], index: 5, kind: output, shape index: {2}]
  %6 = xla_tuple %s3, %s4, %s5
  %s7 = sld [smem:[#allocation0]]
  $region38: #{batch_renorm2d_forward.1} parent=0
    _
  %s9 = ssub.s32 1, %s7
  %s10 = scalar_select 0, %s9, %s7
  // Predicated region
  $region2: #{batch_renorm2d_forward.1} parent=0 // pred_check
    _
  $region3: #{batch_renorm2d_forward.1} parent=0 // pred_check_branch
    %12 = sbr.rel (0) target = $region5
  $region4: #{batch_renorm2d_forward.1} parent=0 // pred_region
    _
  $region5: #{batch_renorm2d_forward.1} parent=0 // pred_fallthru
    _
  // Predicated region
  $region6: #{batch_renorm2d_forward.1} parent=0 // pred_check
    _
  $region7: #{batch_renorm2d_forward.1} parent=0 // pred_check_branch
    %14 = sbr.rel (0) target = $region9
  $region8: #{batch_renorm2d_forward.1} parent=0 // pred_region
    _
  $region9: #{batch_renorm2d_forward.1} parent=0 // pred_fallthru
    _
  // Predicated region
  $region10: #{batch_renorm2d_forward.1} parent=0 // pred_check
    _
  $region11: #{batch_renorm2d_forward.1} parent=0 // pred_check_branch
    %16 = sbr.rel (0) target = $region13
  $region12: #{batch_renorm2d_forward.1} parent=0 // pred_region
    _
  $region13: #{batch_renorm2d_forward.1} parent=0 // pred_fallthru
    _
  %v17 = vld [vmem:[%s0] sm:$0xff]
  %v18 = vld [vmem:[%s0 + $0x8] sm:$0xff]
  %v21 = vcombine.high %v17, %v17
  %v22 = vcombine.high %v18, %v18
  %vm25 = vcmask 1043456
  %v26 = vsel %vm25, %v17, 0.0
  %v27 = vsel %vm25, %v21, 0.0
  %v28 = vadd.f32 %v26, %v27
  %29 = vadd.xlane.f32.xlu0 %v28
  %v30 = vpop.xlane.xlu0 %29
  %v31 = vsel %vm25, %v18, 0.0
  %v32 = vsel %vm25, %v22, 0.0
  %v33 = vadd.f32 %v31, %v32
  %34 = vadd.xlane.f32.xlu0 %v33
  %v35 = vpop.xlane.xlu0 %34
  %v36 = vmul.f32 %v17, %v17
  %v37 = vmul.f32 %v18, %v18
  %v40 = vcombine.high %v36, %v36
  %v41 = vcombine.high %v37, %v37
  %v44 = vsel %vm25, %v36, 0.0
  %v45 = vsel %vm25, %v40, 0.0
  %v46 = vadd.f32 %v44, %v45
  %47 = vadd.xlane.f32.xlu0 %v46
  %v48 = vpop.xlane.xlu0 %47
  %v49 = vsel %vm25, %v37, 0.0
  %v50 = vsel %vm25, %v41, 0.0
  %v51 = vadd.f32 %v49, %v50
  %52 = vadd.xlane.f32.xlu0 %v51
  %v53 = vpop.xlane.xlu0 %52
  %v54 = vmul.f32 %v30, 0.00390625
  %v55 = vmul.f32 %v35, 0.00390625
  %v56 = vmul.f32 %v30, %v54
  %v57 = vmul.f32 %v35, %v55
  %v58 = vsub.f32 %v48, %v56
  %v59 = vsub.f32 %v53, %v57
  %v60 = vmul.f32 %v58, 0.003921569
  %v61 = vmul.f32 %v59, 0.003921569
  %v62 = vmul.f32 %v54, %v54
  %v63 = vmul.f32 %v55, %v55
  %v64 = vadd.f32 %v60, %v62
  %v65 = vadd.f32 %v61, %v63
  %v66 = vsel %vm25, %v54, 0.0
  %v67 = vsel %vm25, %v55, 0.0
  %v68 = vadd.f32 %v66, %v67
  %v69 = vrcp.pop 2.0
  %v70 = vmul.f32 %v68, %v69
  %v71 = vsel %vm25, %v64, 0.0
  %v72 = vsel %vm25, %v65, 0.0
  %v73 = vadd.f32 %v71, %v72
  %v74 = vmul.f32 %v73, %v69
  %v75 = vmul.f32 %v70, %v70
  %v76 = vsub.f32 %v74, %v75
  %v77 = vmax.f32 %v76, 0.0
  %v78 = vrsqrt.pop %v77
  %v79 = vmul.f32 %v77, %v78
  %vm80 = vcmp.eq.f32.partialorder %v77, inf
  %v81 = vsel %vm80, %v77, %v79
  %vm82 = vcmp.eq.f32.partialorder %v77, 0.0
  %v83 = vand.u32 %v77, 2147483648
  %v84 = vsel %vm82, %v83, %v81
  %v85 = vadd.f32 %v84, 1e-05
  %v86 = vrcp.pop %v85
  %v87 = vmul.f32 1.0, %v86
  %v88 = vld [vmem:[%s1] sm:$0xf]
  %v89 = vmul.f32 %v88, %v87
  %v90 = vld [vmem:[%s2] sm:$0xf]
  %v91 = vmul.f32 %v70, %v89
  %v92 = vsub.f32 %v90, %v91
  %94 = vset.pattern.permute.xlu0 0
  %95 = vperm.xlu0 %94, %v89
  %v96 = vpop.permute.xlu0 %95
  %v98 = vunpack.c.l.s4 839922192
  %v99 = vunpack.c.0.s8 %v98
  %v100 = vlaneseq
  %v101 = vshrl.u32 %v100, 7
  %v102 = vsub.s32 %v99, %v101
  %v103 = vrot.slane %v96, %v102
  %v105 = vmul.f32 %v17, %v103
  %v106 = vmul.f32 %v18, %v103
  %108 = vset.pattern.permute.xlu0 0
  %109 = vperm.xlu0 %108, %v92
  %v110 = vpop.permute.xlu0 %109
  %v112 = vunpack.c.l.s4 839922192
  %v113 = vunpack.c.0.s8 %v112
  %v114 = vlaneseq
  %v115 = vshrl.u32 %v114, 7
  %v116 = vsub.s32 %v113, %v115
  %v117 = vrot.slane %v110, %v116
  %v119 = vadd.f32 %v105, %v117
  %v120 = vadd.f32 %v106, %v117
  %121 = vst [vmem:[%s3] sm:$0xff] %v119
  %122 = vst [vmem:[%s3 + $0x8] sm:$0xff] %v120
  %vm123 = vcmask 3072
  %124 = vst.msk [vmem:[%s4] sm:$0xf] %vm123, %v70
  %125 = vst.msk [vmem:[%s5] sm:$0xf] %vm123, %v84
  // Predicated region
  $region14: #{batch_renorm2d_forward.1} parent=0 // pred_check
    _
  $region15: #{batch_renorm2d_forward.1} parent=0 // pred_check_branch
    %127 = sbr.rel (0) target = $region17
  $region16: #{batch_renorm2d_forward.1} parent=0 // pred_region
    _
  $region17: #{batch_renorm2d_forward.1} parent=0 // pred_fallthru
    _
  // Predicated region
  $region18: #{batch_renorm2d_forward.1} parent=0 // pred_check
    _
  $region19: #{batch_renorm2d_forward.1} parent=0 // pred_check_branch
    %129 = sbr.rel (0) target = $region21
  $region20: #{batch_renorm2d_forward.1} parent=0 // pred_region
    _
  $region21: #{batch_renorm2d_forward.1} parent=0 // pred_fallthru
    _
  // Predicated region
  $region22: #{batch_renorm2d_forward.1} parent=0 // pred_check
    _
  $region23: #{batch_renorm2d_forward.1} parent=0 // pred_check_branch
    %131 = sbr.rel (0) target = $region25
  $region24: #{batch_renorm2d_forward.1} parent=0 // pred_region
    _
  $region25: #{batch_renorm2d_forward.1} parent=0 // pred_fallthru
    _
  // Predicated region
  $region26: #{batch_renorm2d_forward.1} parent=0 // pred_check
    _
  $region27: #{batch_renorm2d_forward.1} parent=0 // pred_check_branch
    %133 = sbr.rel (0) target = $region29
  $region28: #{batch_renorm2d_forward.1} parent=0 // pred_region
    _
  $region29: #{batch_renorm2d_forward.1} parent=0 // pred_fallthru
    _
  // Predicated region
  $region30: #{batch_renorm2d_forward.1} parent=0 // pred_check
    _
  $region31: #{batch_renorm2d_forward.1} parent=0 // pred_check_branch
    %135 = sbr.rel (0) target = $region33
  $region32: #{batch_renorm2d_forward.1} parent=0 // pred_region
    _
  $region33: #{batch_renorm2d_forward.1} parent=0 // pred_fallthru
    _
  // Predicated region
  $region34: #{batch_renorm2d_forward.1} parent=0 // pred_check
    _
  $region35: #{batch_renorm2d_forward.1} parent=0 // pred_check_branch
    %137 = sbr.rel (0) target = $region37
  $region36: #{batch_renorm2d_forward.1} parent=0 // pred_region
    _
  $region37: #{batch_renorm2d_forward.1} parent=0 // pred_fallthru
    _

</llo_original>
